<compile_context>
chip_gen: v7x
topology: tpu7x:2x2x1
jax: 0.10.0
libtpu: 0.0.40
codegen_flags: <defaults>
</compile_context>

<pallas_src>
import functools

import jax
import jax.numpy as jnp
from jax.experimental import pallas as pl
from jax.experimental.pallas import tpu as pltpu


def _round_up(v, m):
    return ((v + m - 1) // m) * m


def _choose_tile(n, tile_n):
    """Row-tile size: big tiles for big bags, two tiles for small bags (v7x)."""
    assert tile_n % 128 == 0 and tile_n >= 128, "tile_n must be a multiple of 128"
    if n >= 2 * tile_n:
        return tile_n
    # Smaller bags: aim for two row-tiles so both v7x TensorCores get work under
    # the "parallel" grid axis; keep the tile sublane-aligned (multiple of 8).
    return max(8, _round_up(-(-n // 2), 8))


def _gated_att_kernel(x_ref, wvu_ref, bvu_ref, ww_ref, bw_ref, a_ref,
                      *, hidden_pad, branches, act_dtype):
    # x tile streamed as f32 from HBM; cast to bf16 in-kernel for the MXU
    # (saves a full HBM pad/cast pass over x in the wrapper).
    x = x_ref[...].astype(jnp.bfloat16)                                # (tile, E)

    # One fused wide MXU matmul for both branches, f32 accumulation.
    h = jnp.dot(x, wvu_ref[...], preferred_element_type=jnp.float32)  # (tile, 2*Hp)
    h = h + bvu_ref[...]                                               # f32 bias add

    # Optional bf16 activation path (v6e/v7x): halves intermediate vreg/spill
    # bytes.  Default f32 keeps exact VPU math (and is the right choice on v5e).
    h = h.astype(act_dtype)
    h_v = h[:, :hidden_pad]        # lane-tile-aligned slice (Hp is a 128 multiple)
    h_u = h[:, hidden_pad:]

    av = jnp.tanh(h_v)                                                 # V branch
    au = 0.5 + 0.5 * jnp.tanh(0.5 * h_u)                               # sigmoid via tanh (1 EUP push)
    gated = av * au                                                    # (tile, Hp); padded cols == 0

    # H -> B projection on the MXU.  W_w is padded to 128 output lanes so the
    # matmul is lane-dense; only the first `branches` columns are real.
    a = jnp.dot(gated, ww_ref[...], preferred_element_type=jnp.float32)
    a = a + bw_ref[...]                                                # (tile, 128)

    # Tiny masked store of the (tile, B) attention column (writeback volume is
    # negligible next to the streamed x traffic).
    a_ref[...] = a[:, :branches].astype(a_ref.dtype)


def prepare_gated_att_params(wv, bv, wu, bu, ww, bw):
    """Fuse / pad / cast the module weights once (hoisted out of the hot path).

    wv, wu : (E, H) pre-transposed Linear weights (PyTorch stores (out, in)).
    bv, bu : (1, H);  ww : (H, B);  bw : (1, B).
    """
    E, H = wv.shape
    B = ww.shape[1]
    Hp = _round_up(H, 128)   # lane-tile aligned per-branch width
    Bp = 128                 # lane-dense attention-branch width for the MXU

    def pad_w(w):            # (E, H) -> (E, Hp)
        return jnp.pad(w, ((0, 0), (0, Hp - H)))

    def pad_b(b):            # (1, H) -> (1, Hp)
        return jnp.pad(b, ((0, 0), (0, Hp - H)))

    wvu = jnp.concatenate([pad_w(wv), pad_w(wu)], axis=1).astype(jnp.bfloat16)  # (E, 2Hp)
    bvu = jnp.concatenate([pad_b(bv), pad_b(bu)], axis=1).astype(jnp.float32)   # (1, 2Hp)
    ww_p = jnp.pad(ww, ((0, Hp - H), (0, Bp - B))).astype(jnp.float32)          # (Hp, Bp)
    bw_p = jnp.pad(bw, ((0, 0), (0, Bp - B))).astype(jnp.float32)               # (1, Bp)

    return {"wvu": wvu, "bvu": bvu, "ww": ww_p, "bw": bw_p,
            "embed": E, "hidden_pad": Hp, "branches": B}


def gated_att_forward(x, params, *, tile_n=512, act_dtype=jnp.float32):
    """GatedAtt_net forward.  x : (N, E) float32.  Returns (A, x), A : (N, B)."""
    N, E = x.shape
    assert E == params["embed"]
    Hp = params["hidden_pad"]
    B = params["branches"]
    Bp = params["ww"].shape[1]
    wvu, bvu, ww, bw = params["wvu"], params["bvu"], params["ww"], params["bw"]

    tile = _choose_tile(N, tile_n)
    grid = (pl.cdiv(N, tile),)   # ragged N: last block is partial / masked

    kernel = functools.partial(_gated_att_kernel,
                               hidden_pad=Hp, branches=B, act_dtype=act_dtype)

    a = pl.pallas_call(
        kernel,
        out_shape=jax.ShapeDtypeStruct((N, B), jnp.float32),
        grid_spec=pltpu.PrefetchScalarGridSpec(
            num_scalar_prefetch=0,
            grid=grid,
            in_specs=[
                pl.BlockSpec((tile, E), lambda i: (i, 0)),      # x rows (streamed f32)
                pl.BlockSpec((E, 2 * Hp), lambda i: (0, 0)),    # fused W_V | W_U (bf16)
                pl.BlockSpec((1, 2 * Hp), lambda i: (0, 0)),    # fused b_V | b_U (f32)
                pl.BlockSpec((Hp, Bp), lambda i: (0, 0)),       # padded W_w (f32)
                pl.BlockSpec((1, Bp), lambda i: (0, 0)),        # padded b_w (f32)
            ],
            out_specs=pl.BlockSpec((tile, B), lambda i: (i, 0)),
        ),
        compiler_params=pltpu.CompilerParams(
            dimension_semantics=("parallel",),
        ),
    )(x, wvu, bvu, ww, bw)

    # Module returns (A, x); x is passed through unchanged.
    return a, x


def _reference(x, wv, bv, wu, bu, ww, bw):
    av = jnp.tanh(x @ wv + bv)
    au = jax.nn.sigmoid(x @ wu + bu)
    return (av * au) @ ww + bw


if __name__ == "__main__":
    # Small shapes consistent with the module (embed/hidden shrunk from 1024/128).
    E = 128   # embed_size
    H = 32    # hidden_size (deliberately not a 128 multiple: exercises Hp padding)
    B = 1     # ATTENTION_BRANCHES

    key = jax.random.PRNGKey(0)
    kx, k1, k2, k3, k4, k5, k6, kx2 = jax.random.split(key, 8)

    # PyTorch Linear stores W as (out, in); here weights are pre-transposed.
    wv = jax.random.normal(k1, (E, H), dtype=jnp.float32) * 0.05
    bv = jax.random.normal(k2, (1, H), dtype=jnp.float32) * 0.05
    wu = jax.random.normal(k3, (E, H), dtype=jnp.float32) * 0.05
    bu = jax.random.normal(k4, (1, H), dtype=jnp.float32) * 0.05
    ww = jax.random.normal(k5, (H, B), dtype=jnp.float32) * 0.05
    bw = jax.random.normal(k6, (1, B), dtype=jnp.float32) * 0.05

    # Fuse/pad/cast weights ONCE (not per forward call).
    params = prepare_gated_att_params(wv, bv, wu, bu, ww, bw)

    # --- Check 1: small bag (two 8-row tiles, both v7x cores busy) ---
    N1 = 16
    x1 = jax.random.normal(kx, (N1, E), dtype=jnp.float32)
    A1, x1_out = gated_att_forward(x1, params)
    jax.block_until_ready((A1, x1_out))

    a1_ref = _reference(x1, wv, bv, wu, bu, ww, bw)
    assert A1.shape == (N1, B)
    assert x1_out.shape == (N1, E)
    # bf16 MXU inputs with f32 accumulation -> loosened tolerance.
    assert jnp.allclose(A1, a1_ref, atol=2e-2, rtol=2e-2)
    assert jnp.array_equal(x1_out, x1)

    # --- Check 2: ragged N, multiple tiles with a masked partial last block ---
    N2 = 200
    x2 = jax.random.normal(kx2, (N2, E), dtype=jnp.float32)
    A2, x2_out = gated_att_forward(x2, params)
    jax.block_until_ready((A2, x2_out))

    a2_ref = _reference(x2, wv, bv, wu, bu, ww, bw)
    assert A2.shape == (N2, B)
    assert jnp.allclose(A2, a2_ref, atol=2e-2, rtol=2e-2)
    assert jnp.array_equal(x2_out, x2)

    # --- Check 3: bf16 activation path (the v6e/v7x configuration) ---
    A3, _ = gated_att_forward(x2, params, act_dtype=jnp.bfloat16)
    jax.block_until_ready(A3)
    assert jnp.allclose(A3, a2_ref, atol=3e-2, rtol=3e-2)

    print("KERNEL_OK")
</pallas_src>

<mosaic_0001>
module attributes {stable_mosaic.version = 11 : i64} {
  func.func @_gated_att_kernel(%arg0: i32, %arg1: memref<8x128xf32, #tpu.memory_space<vmem>>, %arg2: memref<128x256xbf16, #tpu.memory_space<vmem>>, %arg3: memref<1x256xf32, #tpu.memory_space<vmem>>, %arg4: memref<128x128xf32, #tpu.memory_space<vmem>>, %arg5: memref<1x128xf32, #tpu.memory_space<vmem>>, %arg6: memref<8x1xf32, #tpu.memory_space<vmem>>) attributes {dimension_semantics = [#tpu.dimension_semantics<parallel>], iteration_bounds = array<i64: 2>, scalar_prefetch = 0 : i64, scratch_operands = 0 : i64, tpu.core_type = #tpu.core_type<tc>, window_params = [{transform_indices = @transform_0, window_bounds = array<i64: 8, 128>}, {pipeline_mode = #tpu.pipeline_mode<synchronous>, transform_indices = @transform_1, window_bounds = array<i64: 128, 256>}, {pipeline_mode = #tpu.pipeline_mode<synchronous>, transform_indices = @transform_2, window_bounds = array<i64: 1, 256>}, {pipeline_mode = #tpu.pipeline_mode<synchronous>, transform_indices = @transform_3, window_bounds = array<i64: 128, 128>}, {pipeline_mode = #tpu.pipeline_mode<synchronous>, transform_indices = @transform_4, window_bounds = array<i64: 1, 128>}, {transform_indices = @transform_5, window_bounds = array<i64: 8, 1>}]} {
    %c0 = arith.constant 0 : index
    %c0_0 = arith.constant 0 : index
    %0 = vector.load %arg1[%c0, %c0_0] : memref<8x128xf32, #tpu.memory_space<vmem>>, vector<8x128xf32>
    %1 = arith.truncf %0 : vector<8x128xf32> to vector<8x128xbf16>
    %c0_1 = arith.constant 0 : index
    %c0_2 = arith.constant 0 : index
    %2 = vector.load %arg2[%c0_1, %c0_2] : memref<128x256xbf16, #tpu.memory_space<vmem>>, vector<128x256xbf16>
    %cst = arith.constant dense<0.000000e+00> : vector<8x256xf32>
    %3 = tpu.matmul %1, %2, %cst {dimension_numbers = #tpu.dot_dimension_numbers<[1], [0], [0], [1], [0, 0, 1, 1], [], []>} : vector<8x128xbf16>, vector<128x256xbf16>, vector<8x256xf32> -> vector<8x256xf32>
    %c0_3 = arith.constant 0 : index
    %c0_4 = arith.constant 0 : index
    %4 = vector.load %arg3[%c0_3, %c0_4] : memref<1x256xf32, #tpu.memory_space<vmem>>, vector<1x256xf32>
    %5 = vector.broadcast %4 : vector<1x256xf32> to vector<8x256xf32>
    %6 = arith.addf %3, %5 : vector<8x256xf32>
    %7 = vector.extract_strided_slice %6 {offsets = [0, 0], sizes = [8, 128], strides = [1, 1]} : vector<8x256xf32> to vector<8x128xf32>
    %8 = vector.extract_strided_slice %6 {offsets = [0, 128], sizes = [8, 128], strides = [1, 1]} : vector<8x256xf32> to vector<8x128xf32>
    %9 = math.tanh %7 : vector<8x128xf32>
    %cst_5 = arith.constant 5.000000e-01 : f32
    %10 = vector.broadcast %cst_5 : f32 to vector<8x128xf32>
    %11 = arith.mulf %10, %8 : vector<8x128xf32>
    %12 = math.tanh %11 : vector<8x128xf32>
    %cst_6 = arith.constant 5.000000e-01 : f32
    %13 = vector.broadcast %cst_6 : f32 to vector<8x128xf32>
    %14 = arith.mulf %13, %12 : vector<8x128xf32>
    %cst_7 = arith.constant 5.000000e-01 : f32
    %15 = vector.broadcast %cst_7 : f32 to vector<8x128xf32>
    %16 = arith.addf %15, %14 : vector<8x128xf32>
    %17 = arith.mulf %9, %16 : vector<8x128xf32>
    %c0_8 = arith.constant 0 : index
    %c0_9 = arith.constant 0 : index
    %18 = vector.load %arg4[%c0_8, %c0_9] : memref<128x128xf32, #tpu.memory_space<vmem>>, vector<128x128xf32>
    %cst_10 = arith.constant dense<0.000000e+00> : vector<8x128xf32>
    %19 = tpu.matmul %17, %18, %cst_10 {dimension_numbers = #tpu.dot_dimension_numbers<[1], [0], [0], [1], [0, 0, 1, 1], [], []>} : vector<8x128xf32>, vector<128x128xf32>, vector<8x128xf32> -> vector<8x128xf32>
    %c0_11 = arith.constant 0 : index
    %c0_12 = arith.constant 0 : index
    %20 = vector.load %arg5[%c0_11, %c0_12] : memref<1x128xf32, #tpu.memory_space<vmem>>, vector<1x128xf32>
    %21 = vector.broadcast %20 : vector<1x128xf32> to vector<8x128xf32>
    %22 = arith.addf %19, %21 : vector<8x128xf32>
    %23 = vector.extract_strided_slice %22 {offsets = [0, 0], sizes = [8, 1], strides = [1, 1]} : vector<8x128xf32> to vector<8x1xf32>
    %c0_13 = arith.constant 0 : index
    %c0_14 = arith.constant 0 : index
    %24 = vector.load %arg6[%c0_13, %c0_14] : memref<8x1xf32, #tpu.memory_space<vmem>>, vector<8x1xf32>
    tpu.vector_store %arg6[%c0_13, %c0_14], %23 {strides = array<i32>} : memref<8x1xf32, #tpu.memory_space<vmem>>, vector<8x1xf32>,
    return
  }
  func.func @transform_0(%arg0: i32) -> (i32, i32) {
    %c0_i32 = arith.constant 0 : i32
    %c0_i32_0 = arith.constant 0 : i32
    return %arg0, %c0_i32 : i32, i32
  }
  func.func @transform_1(%arg0: i32) -> (i32, i32) {
    %c0_i32 = arith.constant 0 : i32
    %c0_i32_0 = arith.constant 0 : i32
    %c0_i32_1 = arith.constant 0 : i32
    return %c0_i32, %c0_i32_0 : i32, i32
  }
  func.func @transform_2(%arg0: i32) -> (i32, i32) {
    %c0_i32 = arith.constant 0 : i32
    %c0_i32_0 = arith.constant 0 : i32
    %c0_i32_1 = arith.constant 0 : i32
    return %c0_i32, %c0_i32_0 : i32, i32
  }
  func.func @transform_3(%arg0: i32) -> (i32, i32) {
    %c0_i32 = arith.constant 0 : i32
    %c0_i32_0 = arith.constant 0 : i32
    %c0_i32_1 = arith.constant 0 : i32
    return %c0_i32, %c0_i32_0 : i32, i32
  }
  func.func @transform_4(%arg0: i32) -> (i32, i32) {
    %c0_i32 = arith.constant 0 : i32
    %c0_i32_0 = arith.constant 0 : i32
    %c0_i32_1 = arith.constant 0 : i32
    return %c0_i32, %c0_i32_0 : i32, i32
  }
  func.func @transform_5(%arg0: i32) -> (i32, i32) {
    %c0_i32 = arith.constant 0 : i32
    %c0_i32_0 = arith.constant 0 : i32
    return %arg0, %c0_i32 : i32, i32
  }
}

</mosaic_0001>

<llo_original>
// kernel: tpu_custom_call.1
$region0: #{tpu_custom_call.1}
  #allocation0 [shape = 'u32[]', space=smem, size = 0x4, offset = 0x4, fixed_abs, tag = 'smem constant byte address 0x4 - core index']
  #allocation1 [shape = 'u32[144,128]{1,0:T(1,128)}', space=vmem, size = 0x12000, scoped, tag = 'internal scratch']
  %s0 = inlined_call_operand.hbm [shape: f32[16,128], index: 0, kind: input, shape index: {}]
  %s1 = inlined_call_operand.hbm [shape: bf16[128,256], index: 1, kind: input, shape index: {}]
  %s2 = inlined_call_operand.vmem [shape: f32[1,256], index: 2, kind: input, shape index: {}]
  %s3 = inlined_call_operand.hbm [shape: f32[128,128], index: 3, kind: input, shape index: {}]
  %s4 = inlined_call_operand.vmem [shape: f32[1,128], index: 4, kind: input, shape index: {}]
  %s5 = inlined_call_operand.vmem [shape: f32[16,1], index: 5, kind: output, shape index: {}]
  %s6 = sld [smem:[#allocation0]]
  $region65: #{tpu_custom_call.1} parent=0
    _
  %s8 = ssub.s32 1, %s6
  %s9 = scalar_select 0, %s8, %s6
  $region1: #{tpu_custom_call.1} parent=0
    #allocation2 [shape = 'u8[8192]{0}', space=vmem, size = 0x2000, scoped, tag = 'input window, operand 0']
    #allocation3 [shape = 's32[2]{0}', space=sflag, size = 0x8, scoped, tag = 'scoped memory for tpu_custom_call.1']
    #allocation4 [shape = 'u8[65536]{0}', space=vmem, size = 0x10000, scoped, tag = 'input window, operand 1, single buffered']
    #allocation5 [shape = 's32[1]{0}', space=sflag, size = 0x4, scoped, tag = 'scoped memory for tpu_custom_call.1']
    #allocation6 [shape = 'u8[65536]{0}', space=vmem, size = 0x10000, scoped, tag = 'input window, operand 3, single buffered']
    %10 = vsyncpa [#allocation3], 0
    %s11 = scalar_lea.sflag [#allocation3], 1
    %12 = vsyncpa %s11, 0
    %13 = vsyncpa [#allocation5], 0
    loop: start=0, step=1, limit=4
    $region2: #{tpu_custom_call.1} parent=1 // loop_pre_header
      _
    $region3: #{tpu_custom_call.1} parent=1 // loop_header
      %s15 = sphi 0, %s19
      %p16 = scmp.ge.s32.totalorder %s15, 4
      %s25 = sphi 0, %s27
      %s28 = sphi 0, %s25
      %s29 = sphi 0, %s28
      %s45 = sphi 0, %s29
      %s49 = sphi 0, %s49
      %s51 = sphi 0, %s49
      %s52 = sphi 0, %s51
      %s66 = sphi 0, %s52
      %s70 = sphi 0, %s70
      %s72 = sphi 0, %s70
      %s73 = sphi 0, %s72
      %s87 = sphi 0, %s73
      %s91 = sphi 0, %s91
      %s93 = sphi 0, %s91
      %s94 = sphi 0, %s93
      %s108 = sphi 0, %s94
      %s112 = sphi 0, %s112
      %s114 = sphi 0, %s112
      %s115 = sphi 0, %s114
      %s129 = sphi 0, %s115
      %s135 = sphi 0, %s137
      %s138 = sphi 0, %s135
      %s139 = sphi 0, %s138
      %s155 = sphi 0, %s139
    $region4: #{tpu_custom_call.1} parent=1 // loop_header_branch
      %18 = sbr.rel (%p16) target = $region8
    $region5: #{tpu_custom_call.1} parent=1 // loop_body
      %s20 = ssub.s32 %s15, 1
      %s21 = ssub.s32 %s15, 2
      %s22 = sadd.s32 %s15, 1
      %s23 = ssub.s32 %s15, %s22
      %p24 = scmp.eq.s32.totalorder %s23, 0
      %s26 = sadd.s32 %s25, 1
      %s27 = scalar_select %p24, %s25, %s26
      %p30 = pneg %p24
      %p31 = scmp.eq.s32.totalorder %s15, 1
      %p32 = por %p30, %p31
      %p33 = scmp.ne.s32.totalorder %s25, %s28
      %p34 = scmp.eq.s32.totalorder %s15, 0
      %p35 = por %p33, %p34
      %p36 = scmp.ne.s32.totalorder %s25, %s28
      %p37 = scmp.eq.s32.totalorder %s20, 1
      %p38 = por %p36, %p37
      %p39 = scmp.ne.s32.totalorder %s28, %s29
      %p40 = scmp.eq.s32.totalorder %s20, 0
      %p41 = por %p39, %p40
      %p42 = scmp.ne.s32.totalorder %s28, %s29
      %p43 = scmp.eq.s32.totalorder %s21, 1
      %p44 = por %p42, %p43
      %p46 = scmp.ne.s32.totalorder %s29, %s45
      %p47 = scmp.eq.s32.totalorder %s21, 0
      %p48 = por %p46, %p47
      %s50 = sadd.s32 %s49, 1
      %p53 = scmp.eq.s32.totalorder %s15, 1
      %p54 = scmp.ne.s32.totalorder %s49, %s51
      %p55 = scmp.eq.s32.totalorder %s15, 0
      %p56 = por %p54, %p55
      %p57 = scmp.ne.s32.totalorder %s49, %s51
      %p58 = scmp.eq.s32.totalorder %s20, 1
      %p59 = por %p57, %p58
      %p60 = scmp.ne.s32.totalorder %s51, %s52
      %p61 = scmp.eq.s32.totalorder %s20, 0
      %p62 = por %p60, %p61
      %p63 = scmp.ne.s32.totalorder %s51, %s52
      %p64 = scmp.eq.s32.totalorder %s21, 1
      %p65 = por %p63, %p64
      %p67 = scmp.ne.s32.totalorder %s52, %s66
      %p68 = scmp.eq.s32.totalorder %s21, 0
      %p69 = por %p67, %p68
      %s71 = sadd.s32 %s70, 1
      %p74 = scmp.eq.s32.totalorder %s15, 1
      %p75 = scmp.ne.s32.totalorder %s70, %s72
      %p76 = scmp.eq.s32.totalorder %s15, 0
      %p77 = por %p75, %p76
      %p78 = scmp.ne.s32.totalorder %s70, %s72
      %p79 = scmp.eq.s32.totalorder %s20, 1
      %p80 = por %p78, %p79
      %p81 = scmp.ne.s32.totalorder %s72, %s73
      %p82 = scmp.eq.s32.totalorder %s20, 0
      %p83 = por %p81, %p82
      %p84 = scmp.ne.s32.totalorder %s72, %s73
      %p85 = scmp.eq.s32.totalorder %s21, 1
      %p86 = por %p84, %p85
      %p88 = scmp.ne.s32.totalorder %s73, %s87
      %p89 = scmp.eq.s32.totalorder %s21, 0
      %p90 = por %p88, %p89
      %s92 = sadd.s32 %s91, 1
      %p95 = scmp.eq.s32.totalorder %s15, 1
      %p96 = scmp.ne.s32.totalorder %s91, %s93
      %p97 = scmp.eq.s32.totalorder %s15, 0
      %p98 = por %p96, %p97
      %p99 = scmp.ne.s32.totalorder %s91, %s93
      %p100 = scmp.eq.s32.totalorder %s20, 1
      %p101 = por %p99, %p100
      %p102 = scmp.ne.s32.totalorder %s93, %s94
      %p103 = scmp.eq.s32.totalorder %s20, 0
      %p104 = por %p102, %p103
      %p105 = scmp.ne.s32.totalorder %s93, %s94
      %p106 = scmp.eq.s32.totalorder %s21, 1
      %p107 = por %p105, %p106
      %p109 = scmp.ne.s32.totalorder %s94, %s108
      %p110 = scmp.eq.s32.totalorder %s21, 0
      %p111 = por %p109, %p110
      %s113 = sadd.s32 %s112, 1
      %p116 = scmp.eq.s32.totalorder %s15, 1
      %p117 = scmp.ne.s32.totalorder %s112, %s114
      %p118 = scmp.eq.s32.totalorder %s15, 0
      %p119 = por %p117, %p118
      %p120 = scmp.ne.s32.totalorder %s112, %s114
      %p121 = scmp.eq.s32.totalorder %s20, 1
      %p122 = por %p120, %p121
      %p123 = scmp.ne.s32.totalorder %s114, %s115
      %p124 = scmp.eq.s32.totalorder %s20, 0
      %p125 = por %p123, %p124
      %p126 = scmp.ne.s32.totalorder %s114, %s115
      %p127 = scmp.eq.s32.totalorder %s21, 1
      %p128 = por %p126, %p127
      %p130 = scmp.ne.s32.totalorder %s115, %s129
      %p131 = scmp.eq.s32.totalorder %s21, 0
      %p132 = por %p130, %p131
      %s133 = ssub.s32 %s15, %s22
      %p134 = scmp.eq.s32.totalorder %s133, 0
      %s136 = sadd.s32 %s135, 1
      %s137 = scalar_select %p134, %s135, %s136
      %p140 = pneg %p134
      %p141 = scmp.eq.s32.totalorder %s15, 1
      %p142 = por %p140, %p141
      %p143 = scmp.ne.s32.totalorder %s135, %s138
      %p144 = scmp.eq.s32.totalorder %s15, 0
      %p145 = por %p143, %p144
      %p146 = scmp.ne.s32.totalorder %s135, %s138
      %p147 = scmp.eq.s32.totalorder %s20, 1
      %p148 = por %p146, %p147
      %p149 = scmp.ne.s32.totalorder %s138, %s139
      %p150 = scmp.eq.s32.totalorder %s20, 0
      %p151 = por %p149, %p150
      %p152 = scmp.ne.s32.totalorder %s138, %s139
      %p153 = scmp.eq.s32.totalorder %s21, 1
      %p154 = por %p152, %p153
      %p156 = scmp.ne.s32.totalorder %s139, %s155
      %p157 = scmp.eq.s32.totalorder %s21, 0
      %p158 = por %p156, %p157
      %p159 = scmp.le.s32.totalorder 1, %s15
      %p160 = scmp.lt.s32.totalorder %s15, 3
      %p161 = pnand %p159, %p160
      %p162 = pneg %p161
      // Predicated region
      $region9: #{tpu_custom_call.1} parent=5 // pred_check
        _
      $region10: #{tpu_custom_call.1} parent=5 // pred_check_branch
        %164 = sbr.rel (%p161) target = $region12
      $region11: #{tpu_custom_call.1} parent=5 // pred_region
        %s165 = ssub.s32 %s15, 1
        // Predicated region
        $region13: #{tpu_custom_call.1} parent=11 // pred_check
          %p166 = pneg %p62
        $region14: #{tpu_custom_call.1} parent=11 // pred_check_branch
          %168 = sbr.rel (%p166) target = $region16
        $region15: #{tpu_custom_call.1} parent=11 // pred_region
          %s170 = ssub.s32 2048, 2048
          %171 = vsyncadd [#allocation5], %s170
          %s172 = sshll.u32 [#allocation4], 4
          %s173 = int_to_ptr.vmem [resolvable:$true] %s172
          %178 = dma.hbm_to_vmem [thread:$0]  %s1, 2048, %s173, [#allocation5], 128, 128, 8
        $region16: #{tpu_custom_call.1} parent=11 // pred_fallthru
          _
        // Predicated region
        $region17: #{tpu_custom_call.1} parent=11 // pred_check
          %p179 = pneg %p83
        $region18: #{tpu_custom_call.1} parent=11 // pred_check_branch
          %181 = sbr.rel (%p179) target = $region20
        $region19: #{tpu_custom_call.1} parent=11 // pred_region
          _
        $region20: #{tpu_custom_call.1} parent=11 // pred_fallthru
          _
        // Predicated region
        $region21: #{tpu_custom_call.1} parent=11 // pred_check
          %p182 = pneg %p104
        $region22: #{tpu_custom_call.1} parent=11 // pred_check_branch
          %184 = sbr.rel (%p182) target = $region24
        $region23: #{tpu_custom_call.1} parent=11 // pred_region
          %s186 = ssub.s32 2048, 2048
          %187 = vsyncadd [#allocation5], %s186
          %s188 = sshll.u32 [#allocation6], 4
          %s189 = int_to_ptr.vmem [resolvable:$true] %s188
          %194 = dma.hbm_to_vmem [thread:$0]  %s3, 2048, %s189, [#allocation5], 128, 128, 8
        $region24: #{tpu_custom_call.1} parent=11 // pred_fallthru
          _
        // Predicated region
        $region25: #{tpu_custom_call.1} parent=11 // pred_check
          %p195 = pneg %p125
        $region26: #{tpu_custom_call.1} parent=11 // pred_check_branch
          %197 = sbr.rel (%p195) target = $region28
        $region27: #{tpu_custom_call.1} parent=11 // pred_region
          _
        $region28: #{tpu_custom_call.1} parent=11 // pred_fallthru
          _
      $region12: #{tpu_custom_call.1} parent=5 // pred_fallthru
        _
      %p198 = scmp.lt.s32.totalorder %s15, 2
      // Predicated region
      $region29: #{tpu_custom_call.1} parent=5 // pred_check
        %p199 = pneg %p198
      $region30: #{tpu_custom_call.1} parent=5 // pred_check_branch
        %201 = sbr.rel (%p199) target = $region32
      $region31: #{tpu_custom_call.1} parent=5 // pred_region
        // Predicated region
        $region33: #{tpu_custom_call.1} parent=31 // pred_check
          %p202 = pneg %p35
        $region34: #{tpu_custom_call.1} parent=31 // pred_check_branch
          %204 = sbr.rel (%p202) target = $region36
        $region35: #{tpu_custom_call.1} parent=31 // pred_region
          %s205 = sand.u32 %s25, 1
          %s206 = scalar_lea.sflag [#allocation3], %s205
          %s207 = sand.u32 %s25, 1
          %s208 = smul.addr %s207, 8
          %s209 = scalar_lea.vmem [#allocation2], %s208
          %s211 = ssub.s32 128, 128
          %212 = vsyncadd %s206, %s211
          %s213 = smul.addr %s15, 128
          %s214 = scalar_lea.hbm %s0, %s213
          %s216 = sshll.u32 %s209, 4
          %s217 = int_to_ptr.vmem [resolvable:$true] %s216
          %219 = dma.hbm_to_vmem [thread:$0]  %s214, 128, %s217, %s206
        $region36: #{tpu_custom_call.1} parent=31 // pred_fallthru
          _
      $region32: #{tpu_custom_call.1} parent=5 // pred_fallthru
        _
      %p220 = scmp.le.s32.totalorder 1, %s15
      %p221 = scmp.lt.s32.totalorder %s15, 3
      %p222 = pnand %p220, %p221
      %p223 = pneg %p222
      // Predicated region
      $region37: #{tpu_custom_call.1} parent=5 // pred_check
        _
      $region38: #{tpu_custom_call.1} parent=5 // pred_check_branch
        %225 = sbr.rel (%p222) target = $region40
      $region39: #{tpu_custom_call.1} parent=5 // pred_region
        %s226 = ssub.s32 %s15, 1
        %s227 = sand.u32 %s28, 1
        %s228 = scalar_lea.sflag [#allocation3], %s227
        %s229 = sand.u32 %s28, 1
        %s230 = smul.addr %s229, 8
        %s231 = scalar_lea.vmem [#allocation2], %s230
        // Predicated region
        $region41: #{tpu_custom_call.1} parent=39 // pred_check
          %p232 = pneg %p41
        $region42: #{tpu_custom_call.1} parent=39 // pred_check_branch
          %234 = sbr.rel (%p232) target = $region44
        $region43: #{tpu_custom_call.1} parent=39 // pred_region
          %235 = dma.done %s228, 128
        $region44: #{tpu_custom_call.1} parent=39 // pred_fallthru
          _
        // Predicated region
        $region45: #{tpu_custom_call.1} parent=39 // pred_check
          %p236 = pneg %p62
        $region46: #{tpu_custom_call.1} parent=39 // pred_check_branch
          %238 = sbr.rel (%p236) target = $region48
        $region47: #{tpu_custom_call.1} parent=39 // pred_region
          %239 = dma.done [#allocation5], 2048
        $region48: #{tpu_custom_call.1} parent=39 // pred_fallthru
          _
        // Predicated region
        $region49: #{tpu_custom_call.1} parent=39 // pred_check
          %p240 = pneg %p104
        $region50: #{tpu_custom_call.1} parent=39 // pred_check_branch
          %242 = sbr.rel (%p240) target = $region52
        $region51: #{tpu_custom_call.1} parent=39 // pred_region
          %243 = dma.done [#allocation5], 2048
        $region52: #{tpu_custom_call.1} parent=39 // pred_fallthru
          _
        %s244 = sand.u32 %s28, 1
        %s245 = scalar_lea.sflag [#allocation3], %s244
        %s246 = sand.u32 %s28, 1
        %s247 = smul.addr %s246, 8
        %s248 = scalar_lea.vmem [#allocation2], %s247
        %p249 = pneg %p41
        %p250 = pneg %p38
        %p251 = pneg %p62
        %p252 = pneg %p59
        %p253 = pneg %p83
        %p254 = pneg %p80
        %p255 = pneg %p104
        %p256 = pneg %p101
        %p257 = pneg %p125
        %p258 = pneg %p122
        %p259 = pneg %p151
        %p260 = pneg %p148
        %p261 = scmp.lt.s32.totalorder %s20, 1
        %s262 = scalar_select %p261, %s20, 1
        %s263 = smul.addr %s262, 8
        %s264 = scalar_lea.vmem %s5, %s263
        %p265 = scmp.lt.s32.totalorder %s20, 1
        %s266 = scalar_select %p265, %s20, 1
        %s267 = smul.addr %s266, 8
        %s268 = scalar_lea.vmem %s5, %s267
        %v270 = vld [vmem:[%s231] sm:$0xff]
        %v271 = vpack.c.bf16 %v270, %v270
        %v272 = vld [vmem:[#allocation4] sm:$0xff]
        %v273 = vld [vmem:[#allocation4 + $0x8] sm:$0xff]
        %v274 = vld [vmem:[#allocation4 + $0x10] sm:$0xff]
        %v275 = vld [vmem:[#allocation4 + $0x18] sm:$0xff]
        %v276 = vld [vmem:[#allocation4 + $0x20] sm:$0xff]
        %v277 = vld [vmem:[#allocation4 + $0x28] sm:$0xff]
        %v278 = vld [vmem:[#allocation4 + $0x30] sm:$0xff]
        %v279 = vld [vmem:[#allocation4 + $0x38] sm:$0xff]
        %v280 = vld [vmem:[#allocation4 + $0x40] sm:$0xff]
        %v281 = vld [vmem:[#allocation4 + $0x48] sm:$0xff]
        %v282 = vld [vmem:[#allocation4 + $0x50] sm:$0xff]
        %v283 = vld [vmem:[#allocation4 + $0x58] sm:$0xff]
        %v284 = vld [vmem:[#allocation4 + $0x60] sm:$0xff]
        %v285 = vld [vmem:[#allocation4 + $0x68] sm:$0xff]
        %v286 = vld [vmem:[#allocation4 + $0x70] sm:$0xff]
        %v287 = vld [vmem:[#allocation4 + $0x78] sm:$0xff]
        %v288 = vld [vmem:[%s2] sm:$0x3]
        %v290 = vlaneseq
        %v291 = vshrl.u32 %v290, 7
        %v292 = vsub.s32 0, %v291
        %v293 = vrot.slane %v288, %v292
        %v294 = vlaneseq
        %v295 = vshrl.u32 %v294, 7
        %v296 = vsub.s32 1, %v295
        %v297 = vrot.slane %v288, %v296
        %v316 = vunpack.c.l.b16 %v272
        %v317 = vunpack.c.h.b16 %v272
        %v318 = vunpack.c.l.b16 %v273
        %v319 = vunpack.c.h.b16 %v273
        %v320 = vunpack.c.l.b16 %v274
        %v321 = vunpack.c.h.b16 %v274
        %v322 = vunpack.c.l.b16 %v275
        %v323 = vunpack.c.h.b16 %v275
        %v324 = vunpack.c.l.b16 %v276
        %v325 = vunpack.c.h.b16 %v276
        %v326 = vunpack.c.l.b16 %v277
        %v327 = vunpack.c.h.b16 %v277
        %v328 = vunpack.c.l.b16 %v278
        %v329 = vunpack.c.h.b16 %v278
        %v330 = vunpack.c.l.b16 %v279
        %v331 = vunpack.c.h.b16 %v279
        %v332 = vunpack.c.l.b16 %v280
        %v333 = vunpack.c.h.b16 %v280
        %v334 = vunpack.c.l.b16 %v281
        %v335 = vunpack.c.h.b16 %v281
        %v336 = vunpack.c.l.b16 %v282
        %v337 = vunpack.c.h.b16 %v282
        %v338 = vunpack.c.l.b16 %v283
        %v339 = vunpack.c.h.b16 %v283
        %v340 = vunpack.c.l.b16 %v284
        %v341 = vunpack.c.h.b16 %v284
        %v342 = vunpack.c.l.b16 %v285
        %v343 = vunpack.c.h.b16 %v285
        %v344 = vunpack.c.l.b16 %v286
        %v345 = vunpack.c.h.b16 %v286
        %v346 = vunpack.c.l.b16 %v287
        %v347 = vunpack.c.h.b16 %v287
        %v348 = vpack.c.b16 %v318, %v316
        %v349 = vpack.c.b16 %v319, %v317
        %v350 = vpack.c.b16 %v322, %v320
        %v351 = vpack.c.b16 %v323, %v321
        %v352 = vpack.c.b16 %v326, %v324
        %v353 = vpack.c.b16 %v327, %v325
        %v354 = vpack.c.b16 %v330, %v328
        %v355 = vpack.c.b16 %v331, %v329
        %v356 = vpack.c.b16 %v334, %v332
        %v357 = vpack.c.b16 %v335, %v333
        %v358 = vpack.c.b16 %v338, %v336
        %v359 = vpack.c.b16 %v339, %v337
        %v360 = vpack.c.b16 %v342, %v340
        %v361 = vpack.c.b16 %v343, %v341
        %v362 = vpack.c.b16 %v346, %v344
        %v363 = vpack.c.b16 %v347, %v345
        %380 = vmatprep.subr.bf16.mxu0 %v349
        %381 = vmatpush1.bf16.msra.mxu0 %v348
        %382 = vmatprep.subr.bf16.mxu0 %v351
        %383 = vmatpush1.bf16.msra.mxu0 %v350
        %384 = vmatprep.subr.bf16.mxu0 %v353
        %385 = vmatpush1.bf16.msra.mxu0 %v352
        %386 = vmatprep.subr.bf16.mxu0 %v355
        %387 = vmatpush1.bf16.msra.mxu0 %v354
        %388 = vmatprep.subr.bf16.mxu0 %v357
        %389 = vmatpush1.bf16.msra.mxu0 %v356
        %390 = vmatprep.subr.bf16.mxu0 %v359
        %391 = vmatpush1.bf16.msra.mxu0 %v358
        %392 = vmatprep.subr.bf16.mxu0 %v361
        %393 = vmatpush1.bf16.msra.mxu0 %v360
        %394 = vmatprep.subr.bf16.mxu0 %v363
        %395 = vmatpush1.bf16.msra.mxu0 %v362
        %396 = vmatprep.subr.bf16.mxu0 0
        %397 = vmatpush1.bf16.msra.mxu0 0
        %398 = vmatprep.subr.bf16.mxu0 0
        %399 = vmatpush1.bf16.msra.mxu0 0
        %400 = vmatprep.subr.bf16.mxu0 0
        %401 = vmatpush1.bf16.msra.mxu0 0
        %402 = vmatprep.subr.bf16.mxu0 0
        %403 = vmatpush1.bf16.msra.mxu0 0
        %404 = vmatprep.subr.bf16.mxu0 0
        %405 = vmatpush1.bf16.msra.mxu0 0
        %406 = vmatprep.subr.bf16.mxu0 0
        %407 = vmatpush1.bf16.msra.mxu0 0
        %408 = vmatprep.subr.bf16.mxu0 0
        %409 = vmatpush1.bf16.msra.mxu0 0
        %410 = vmatprep.subr.bf16.mxu0 0
        %411 = vmatpush1.bf16.msra.mxu0 0
        %412 = vmatprep.mubr.bf16.mxu0 0
        %413 = vmatmul.mubr.bf16.gmra.mrb[0].mxu0 %v271
        %v414 = vpop.f32.mrb[0].mxu0
        %v415 = vadd.f32 %v293, %v414
        %v416 = vpop.f32.mrb[0].mxu0
        %v417 = vadd.f32 %v297, %v416
        %v418 = vpop.f32.mrb[0].mxu0
        %v419 = vpop.f32.mrb[0].mxu0
        %420 = vdwg.mxu0
        %v421 = vtanh.pop %v415
        %v422 = vmul.f32 %v417, 0.5
        %v423 = vtanh.pop %v422
        %v424 = vmul.f32 %v423, 0.5
        %v425 = vadd.f32 %v424, 0.5
        %v426 = vmul.f32 %v421, %v425
        %v427 = vld [vmem:[#allocation6] sm:$0xff]
        %v428 = vld [vmem:[#allocation6 + $0x8] sm:$0xff]
        %v429 = vld [vmem:[#allocation6 + $0x10] sm:$0xff]
        %v430 = vld [vmem:[#allocation6 + $0x18] sm:$0xff]
        %v431 = vld [vmem:[#allocation6 + $0x20] sm:$0xff]
        %v432 = vld [vmem:[#allocation6 + $0x28] sm:$0xff]
        %v433 = vld [vmem:[#allocation6 + $0x30] sm:$0xff]
        %v434 = vld [vmem:[#allocation6 + $0x38] sm:$0xff]
        %v435 = vld [vmem:[#allocation6 + $0x40] sm:$0xff]
        %v436 = vld [vmem:[#allocation6 + $0x48] sm:$0xff]
        %v437 = vld [vmem:[#allocation6 + $0x50] sm:$0xff]
        %v438 = vld [vmem:[#allocation6 + $0x58] sm:$0xff]
        %v439 = vld [vmem:[#allocation6 + $0x60] sm:$0xff]
        %v440 = vld [vmem:[#allocation6 + $0x68] sm:$0xff]
        %v441 = vld [vmem:[#allocation6 + $0x70] sm:$0xff]
        %v442 = vld [vmem:[#allocation6 + $0x78] sm:$0xff]
        %v443 = vld [vmem:[%s4] sm:$0x1]
        %v445 = vlaneseq
        %v446 = vshrl.u32 %v445, 7
        %v447 = vsub.s32 0, %v446
        %v448 = vrot.slane %v443, %v447
        %450 = vmatprep.subr.mxu0 0.0
        %451 = vmatpush1.msra.mxu0 %v427
        %452 = vmatprep.subr.mxu0 0.0
        %453 = vmatpush1.msra.mxu0 %v428
        %454 = vmatprep.subr.mxu0 0.0
        %455 = vmatpush1.msra.mxu0 %v429
        %456 = vmatprep.subr.mxu0 0.0
        %457 = vmatpush1.msra.mxu0 %v430
        %458 = vmatprep.subr.mxu0 0.0
        %459 = vmatpush1.msra.mxu0 %v431
        %460 = vmatprep.subr.mxu0 0.0
        %461 = vmatpush1.msra.mxu0 %v432
        %462 = vmatprep.subr.mxu0 0.0
        %463 = vmatpush1.msra.mxu0 %v433
        %464 = vmatprep.subr.mxu0 0.0
        %465 = vmatpush1.msra.mxu0 %v434
        %466 = vmatprep.subr.mxu0 0.0
        %467 = vmatpush1.msra.mxu0 %v435
        %468 = vmatprep.subr.mxu0 0.0
        %469 = vmatpush1.msra.mxu0 %v436
        %470 = vmatprep.subr.mxu0 0.0
        %471 = vmatpush1.msra.mxu0 %v437
        %472 = vmatprep.subr.mxu0 0.0
        %473 = vmatpush1.msra.mxu0 %v438
        %474 = vmatprep.subr.mxu0 0.0
        %475 = vmatpush1.msra.mxu0 %v439
        %476 = vmatprep.subr.mxu0 0.0
        %477 = vmatpush1.msra.mxu0 %v440
        %478 = vmatprep.subr.mxu0 0.0
        %479 = vmatpush1.msra.mxu0 %v441
        %480 = vmatprep.subr.mxu0 0.0
        %481 = vmatpush1.msra.mxu0 %v442
        %482 = vmatprep.subr.mxu0 0.0
        %483 = vmatpush1.msra.mxu0 0.0
        %484 = vmatprep.subr.mxu0 0.0
        %485 = vmatpush1.msra.mxu0 0.0
        %486 = vmatprep.subr.mxu0 0.0
        %487 = vmatpush1.msra.mxu0 0.0
        %488 = vmatprep.subr.mxu0 0.0
        %489 = vmatpush1.msra.mxu0 0.0
        %490 = vmatprep.subr.mxu0 0.0
        %491 = vmatpush1.msra.mxu0 0.0
        %492 = vmatprep.subr.mxu0 0.0
        %493 = vmatpush1.msra.mxu0 0.0
        %494 = vmatprep.subr.mxu0 0.0
        %495 = vmatpush1.msra.mxu0 0.0
        %496 = vmatprep.subr.mxu0 0.0
        %497 = vmatpush1.msra.mxu0 0.0
        %498 = vmatprep.subr.mxu0 0.0
        %499 = vmatpush1.msra.mxu0 0.0
        %500 = vmatprep.subr.mxu0 0.0
        %501 = vmatpush1.msra.mxu0 0.0
        %502 = vmatprep.subr.mxu0 0.0
        %503 = vmatpush1.msra.mxu0 0.0
        %504 = vmatprep.subr.mxu0 0.0
        %505 = vmatpush1.msra.mxu0 0.0
        %506 = vmatprep.subr.mxu0 0.0
        %507 = vmatpush1.msra.mxu0 0.0
        %508 = vmatprep.subr.mxu0 0.0
        %509 = vmatpush1.msra.mxu0 0.0
        %510 = vmatprep.subr.mxu0 0.0
        %511 = vmatpush1.msra.mxu0 0.0
        %512 = vmatprep.subr.mxu0 0.0
        %513 = vmatpush1.msra.mxu0 0.0
        %514 = vmatprep.mubr.f32.mxu0 0.0
        %515 = vmatmul.mubr.f32.gmra.mrb[0].mxu0 %v426
        %v516 = vpop.f32.mrb[0].mxu0
        %v517 = vadd.f32 %v448, %v516
        %v518 = vpop.f32.mrb[0].mxu0
        %519 = vdwg.mxu0
        %vm520 = vcmask 7168
        %521 = vst.msk [vmem:[%s268] sm:$0xff] %vm520, %v517
        %p522 = scmp.lt.s32.totalorder %s20, 1
        %s523 = scalar_select %p522, %s20, 1
        %s524 = smul.addr %s523, 8
        %s525 = scalar_lea.vmem %s5, %s524
        // Predicated region
        $region53: #{tpu_custom_call.1} parent=39 // pred_check
          %p526 = pneg %p148
        $region54: #{tpu_custom_call.1} parent=39 // pred_check_branch
          %528 = sbr.rel (%p526) target = $region56
        $region55: #{tpu_custom_call.1} parent=39 // pred_region
          _
        $region56: #{tpu_custom_call.1} parent=39 // pred_fallthru
          _
      $region40: #{tpu_custom_call.1} parent=5 // pred_fallthru
        _
      %p529 = scmp.le.s32.totalorder 2, %s15
      // Predicated region
      $region57: #{tpu_custom_call.1} parent=5 // pred_check
        %p530 = pneg %p529
      $region58: #{tpu_custom_call.1} parent=5 // pred_check_branch
        %532 = sbr.rel (%p530) target = $region60
      $region59: #{tpu_custom_call.1} parent=5 // pred_region
        %s533 = ssub.s32 %s15, 2
        // Predicated region
        $region61: #{tpu_custom_call.1} parent=59 // pred_check
          %p534 = pneg %p154
        $region62: #{tpu_custom_call.1} parent=59 // pred_check_branch
          %536 = sbr.rel (%p534) target = $region64
        $region63: #{tpu_custom_call.1} parent=59 // pred_region
          %p537 = scmp.lt.s32.totalorder %s21, 1
          %s538 = scalar_select %p537, %s21, 1
          %s539 = smul.addr %s538, 8
          %s540 = scalar_lea.vmem %s5, %s539
        $region64: #{tpu_custom_call.1} parent=59 // pred_fallthru
          _
      $region60: #{tpu_custom_call.1} parent=5 // pred_fallthru
        _
    $region6: #{tpu_custom_call.1} parent=1 // loop_footer
      %s19 = sadd.s32 1, %s15
    $region7: #{tpu_custom_call.1} parent=1 // loop_footer_branch
      %14 = sbr.rel target = $region3
    $region8: #{tpu_custom_call.1} parent=1 // loop_exit
      _
    %541 = vsyncpa [#allocation3], 1
    %s542 = scalar_lea.sflag [#allocation3], 1
    %543 = vsyncpa %s542, 1
    %544 = vsyncpa [#allocation5], 1

</llo_original>
